<compile_context>
chip_gen: v6e
topology: v6e:2x2x1
jax: 0.10.0
libtpu: 0.0.40
codegen_flags: <defaults>
</compile_context>

<pallas_src>
import jax
import jax.numpy as jnp
from jax.experimental import pallas as pl
from jax.experimental.pallas import tpu as pltpu


def _round_up(n: int, m: int) -> int:
    return ((n + m - 1) // m) * m


def _mlp_kernel(x_ref, w1_ref, b1_ref, w2_ref, b2_ref, w3_ref, b3_ref, o_ref):
    """One batch tile of the fused 3-layer MLP. Weights/biases are VMEM-resident."""
    cdt = w1_ref.dtype  # matmul operand dtype (f32 or bf16)

    # In-kernel cast of the streamed x tile (no extra HBM pass in the wrapper).
    x = x_ref[...].astype(cdt)

    # Layer 1: Linear + ReLU (MXU matmul, f32 accumulation; elementwise in f32)
    h1 = jnp.dot(x, w1_ref[...], preferred_element_type=jnp.float32)
    h1 = jnp.maximum(h1 + b1_ref[...], 0.0)

    # Layer 2: Linear + ReLU
    h2 = jnp.dot(h1.astype(cdt), w2_ref[...], preferred_element_type=jnp.float32)
    h2 = jnp.maximum(h2 + b2_ref[...], 0.0)

    # Output layer: Linear + Sigmoid (EUP)
    logits = jnp.dot(h2.astype(cdt), w3_ref[...],
                     preferred_element_type=jnp.float32) + b3_ref[...]
    o_ref[...] = jax.nn.sigmoid(logits).astype(o_ref.dtype)


def full_nn_forward(x, params, *, block_batch=2048, matmul_dtype=jnp.bfloat16):
    """Fused forward pass of fullNN as a batch-tiled Pallas kernel.

    x:      (batch, input_shape)
    params: dict with w1 (in, h0), b1 (1, h0), w2 (h0, h1), b2 (1, h1),
            w3 (h1, out), b3 (1, out)   (weights stored pre-transposed vs PyTorch)
    block_batch:  target rows per grid step (rounded up to a multiple of 8; the
                  tile is also capped at ceil(batch/2) so the grid keeps >=2 steps).
    matmul_dtype: jnp.bfloat16 (recommended on v5e/v6e/v7x; f32 accumulation) or
                  jnp.float32 for bit-exact results.
    """
    batch, in_dim = x.shape
    h0 = params["w1"].shape[1]
    h1 = params["w2"].shape[1]
    out_dim = params["w3"].shape[1]

    # Only the tiny resident weights are pre-cast; x/output stay in f32 end-to-end.
    w1 = params["w1"].astype(matmul_dtype)
    w2 = params["w2"].astype(matmul_dtype)
    w3 = params["w3"].astype(matmul_dtype)
    b1 = params["b1"].astype(jnp.float32)
    b2 = params["b2"].astype(jnp.float32)
    b3 = params["b3"].astype(jnp.float32)

    # --- batch tile: multiple of 8, at most ceil(batch/2) (>=2 grid steps for v7x) --
    half = _round_up(pl.cdiv(batch, 2), 8)
    tb = max(8, min(_round_up(block_batch, 8), half))
    grid = (pl.cdiv(batch, tb),)

    # --- VMEM budget: double-buffered x/out tiles + resident weights + activations --
    mm_bytes = jnp.dtype(matmul_dtype).itemsize
    x_bytes = jnp.dtype(x.dtype).itemsize
    resident = (w1.size + w2.size + w3.size) * mm_bytes \
        + (b1.size + b2.size + b3.size) * 4
    streamed = 2 * tb * in_dim * x_bytes + 2 * tb * out_dim * 4
    live_act = 4 * tb * max(h0, h1) * 4
    vmem_needed = resident + streamed + live_act

    try:  # per-generation clamp (v7x has only 64 MiB physical VMEM)
        vmem_cap = int(pltpu.get_tpu_info().vmem_capacity_bytes) * 3 // 4
    except Exception:  # pragma: no cover - conservative fallback
        vmem_cap = 48 * 1024 * 1024
    vmem_limit = min(max(2 * vmem_needed, 32 * 1024 * 1024), vmem_cap)

    cost = pl.CostEstimate(
        flops=2 * batch * (in_dim * h0 + h0 * h1 + h1 * out_dim),
        transcendentals=batch * out_dim,  # sigmoid
        bytes_accessed=x.size * x_bytes
        + (w1.size + w2.size + w3.size) * mm_bytes
        + (b1.size + b2.size + b3.size) * 4
        + batch * out_dim * 4,
    )

    # NOTE: resident specs use index_map -> (0, 0) so weights/biases stay in VMEM
    # across grid steps.  (pipeline_mode=pl.Buffered(1) would single-buffer them;
    # negligible here since all weights together are < 0.1 MiB.)
    resident_spec = lambda shape: pl.BlockSpec(shape, lambda i: (0, 0))

    out = pl.pallas_call(
        _mlp_kernel,
        out_shape=jax.ShapeDtypeStruct((batch, out_dim), jnp.float32),
        grid=grid,
        in_specs=[
            pl.BlockSpec((tb, in_dim), lambda i: (i, 0)),   # streamed x tile (unpadded)
            resident_spec((in_dim, h0)),                    # w1 (resident)
            resident_spec((1, h0)),                         # b1
            resident_spec((h0, h1)),                        # w2
            resident_spec((1, h1)),                         # b2
            resident_spec((h1, out_dim)),                   # w3
            resident_spec((1, out_dim)),                    # b3
        ],
        out_specs=pl.BlockSpec((tb, out_dim), lambda i: (i, 0)),
        compiler_params=pltpu.CompilerParams(
            dimension_semantics=("parallel",),
            vmem_limit_bytes=int(vmem_limit),
        ),
        cost_estimate=cost,
    )(x, w1, b1, w2, b2, w3, b3)

    return out


def init_params(key, input_shape, hidden_units, output_shape):
    """Deterministic init mirroring nn.Linear shapes (stored pre-transposed)."""
    k1, k2, k3, k4, k5, k6 = jax.random.split(key, 6)
    h0, h1 = hidden_units

    def _uniform(k, shape, fan_in):
        bound = 1.0 / jnp.sqrt(fan_in)
        return jax.random.uniform(k, shape, jnp.float32, -bound, bound)

    return {
        "w1": _uniform(k1, (input_shape, h0), input_shape),
        "b1": _uniform(k2, (1, h0), input_shape),
        "w2": _uniform(k3, (h0, h1), h0),
        "b2": _uniform(k4, (1, h1), h0),
        "w3": _uniform(k5, (h1, output_shape), h1),
        "b3": _uniform(k6, (1, output_shape), h1),
    }


def _reference_forward(x, p):
    """Plain-JAX reference (same semantics as the PyTorch module)."""
    a1 = jnp.maximum(x @ p["w1"] + p["b1"], 0.0)
    a2 = jnp.maximum(a1 @ p["w2"] + p["b2"], 0.0)
    return jax.nn.sigmoid(a2 @ p["w3"] + p["b3"])


if __name__ == "__main__":
    # Shapes consistent with fullNN(input_shape, hidden_units, output_shape)
    input_shape = 32
    hidden_units = (64, 32)
    output_shape = 4

    key = jax.random.PRNGKey(0)
    kx, kp, kx2 = jax.random.split(key, 3)
    params = init_params(kp, input_shape, hidden_units, output_shape)

    # --- test 1: small batch, single grid step, exact f32 matmuls -----------------
    x = jax.random.normal(kx, (8, input_shape), dtype=jnp.float32)
    out = jax.block_until_ready(full_nn_forward(x, params, matmul_dtype=jnp.float32))
    ref = _reference_forward(x, params)
    assert out.shape == (8, output_shape)
    assert jnp.allclose(out, ref, atol=1e-5, rtol=1e-5)

    # --- test 2a: ragged batch, default tile -> 2 grid steps with a partial block --
    x2 = jax.random.normal(kx2, (300, input_shape), dtype=jnp.float32)
    ref2 = _reference_forward(x2, params)
    out2a = jax.block_until_ready(
        full_nn_forward(x2, params, matmul_dtype=jnp.float32))
    assert out2a.shape == (300, output_shape)
    assert jnp.allclose(out2a, ref2, atol=1e-5, rtol=1e-5)

    # --- test 2b: caller-supplied non-multiple-of-8 tile gets rounded up ----------
    out2b = jax.block_until_ready(
        full_nn_forward(x2, params, block_batch=100, matmul_dtype=jnp.float32))
    assert out2b.shape == (300, output_shape)
    assert jnp.allclose(out2b, ref2, atol=1e-5, rtol=1e-5)

    # --- test 3: default bf16 matmul operands (all generations), f32 accumulation --
    out3 = jax.block_until_ready(full_nn_forward(x2, params))
    assert out3.shape == (300, output_shape)
    assert jnp.allclose(out3, ref2, atol=3e-2, rtol=3e-2)

    print("KERNEL_OK")
</pallas_src>

<mosaic_0001>
module attributes {stable_mosaic.version = 11 : i64} {
  func.func @_mlp_kernel(%arg0: i32, %arg1: memref<8x32xf32, #tpu.memory_space<vmem>>, %arg2: memref<32x64xf32, #tpu.memory_space<vmem>>, %arg3: memref<1x64xf32, #tpu.memory_space<vmem>>, %arg4: memref<64x32xf32, #tpu.memory_space<vmem>>, %arg5: memref<1x32xf32, #tpu.memory_space<vmem>>, %arg6: memref<32x4xf32, #tpu.memory_space<vmem>>, %arg7: memref<1x4xf32, #tpu.memory_space<vmem>>, %arg8: memref<8x4xf32, #tpu.memory_space<vmem>>) attributes {dimension_semantics = [#tpu.dimension_semantics<parallel>], iteration_bounds = array<i64: 1>, scalar_prefetch = 0 : i64, scratch_operands = 0 : i64, tpu.core_type = #tpu.core_type<tc>, window_params = [{transform_indices = @transform_0, window_bounds = array<i64: 8, 32>}, {pipeline_mode = #tpu.pipeline_mode<synchronous>, transform_indices = @transform_1, window_bounds = array<i64: 32, 64>}, {pipeline_mode = #tpu.pipeline_mode<synchronous>, transform_indices = @transform_2, window_bounds = array<i64: 1, 64>}, {pipeline_mode = #tpu.pipeline_mode<synchronous>, transform_indices = @transform_3, window_bounds = array<i64: 64, 32>}, {pipeline_mode = #tpu.pipeline_mode<synchronous>, transform_indices = @transform_4, window_bounds = array<i64: 1, 32>}, {pipeline_mode = #tpu.pipeline_mode<synchronous>, transform_indices = @transform_5, window_bounds = array<i64: 32, 4>}, {pipeline_mode = #tpu.pipeline_mode<synchronous>, transform_indices = @transform_6, window_bounds = array<i64: 1, 4>}, {transform_indices = @transform_7, window_bounds = array<i64: 8, 4>}]} {
    %c0 = arith.constant 0 : index
    %c0_0 = arith.constant 0 : index
    %0 = vector.load %arg1[%c0, %c0_0] : memref<8x32xf32, #tpu.memory_space<vmem>>, vector<8x32xf32>
    %c0_1 = arith.constant 0 : index
    %c0_2 = arith.constant 0 : index
    %1 = vector.load %arg2[%c0_1, %c0_2] : memref<32x64xf32, #tpu.memory_space<vmem>>, vector<32x64xf32>
    %cst = arith.constant dense<0.000000e+00> : vector<8x64xf32>
    %2 = tpu.matmul %0, %1, %cst {dimension_numbers = #tpu.dot_dimension_numbers<[1], [0], [0], [1], [0, 0, 1, 1], [], []>} : vector<8x32xf32>, vector<32x64xf32>, vector<8x64xf32> -> vector<8x64xf32>
    %c0_3 = arith.constant 0 : index
    %c0_4 = arith.constant 0 : index
    %3 = vector.load %arg3[%c0_3, %c0_4] : memref<1x64xf32, #tpu.memory_space<vmem>>, vector<1x64xf32>
    %4 = vector.broadcast %3 : vector<1x64xf32> to vector<8x64xf32>
    %5 = arith.addf %2, %4 : vector<8x64xf32>
    %cst_5 = arith.constant 0.000000e+00 : f32
    %6 = vector.broadcast %cst_5 : f32 to vector<8x64xf32>
    %7 = arith.maximumf %5, %6 : vector<8x64xf32>
    %c0_6 = arith.constant 0 : index
    %c0_7 = arith.constant 0 : index
    %8 = vector.load %arg4[%c0_6, %c0_7] : memref<64x32xf32, #tpu.memory_space<vmem>>, vector<64x32xf32>
    %cst_8 = arith.constant dense<0.000000e+00> : vector<8x32xf32>
    %9 = tpu.matmul %7, %8, %cst_8 {dimension_numbers = #tpu.dot_dimension_numbers<[1], [0], [0], [1], [0, 0, 1, 1], [], []>} : vector<8x64xf32>, vector<64x32xf32>, vector<8x32xf32> -> vector<8x32xf32>
    %c0_9 = arith.constant 0 : index
    %c0_10 = arith.constant 0 : index
    %10 = vector.load %arg5[%c0_9, %c0_10] : memref<1x32xf32, #tpu.memory_space<vmem>>, vector<1x32xf32>
    %11 = vector.broadcast %10 : vector<1x32xf32> to vector<8x32xf32>
    %12 = arith.addf %9, %11 : vector<8x32xf32>
    %cst_11 = arith.constant 0.000000e+00 : f32
    %13 = vector.broadcast %cst_11 : f32 to vector<8x32xf32>
    %14 = arith.maximumf %12, %13 : vector<8x32xf32>
    %c0_12 = arith.constant 0 : index
    %c0_13 = arith.constant 0 : index
    %15 = vector.load %arg6[%c0_12, %c0_13] : memref<32x4xf32, #tpu.memory_space<vmem>>, vector<32x4xf32>
    %cst_14 = arith.constant dense<0.000000e+00> : vector<8x4xf32>
    %16 = tpu.matmul %14, %15, %cst_14 {dimension_numbers = #tpu.dot_dimension_numbers<[1], [0], [0], [1], [0, 0, 1, 1], [], []>} : vector<8x32xf32>, vector<32x4xf32>, vector<8x4xf32> -> vector<8x4xf32>
    %c0_15 = arith.constant 0 : index
    %c0_16 = arith.constant 0 : index
    %17 = vector.load %arg7[%c0_15, %c0_16] : memref<1x4xf32, #tpu.memory_space<vmem>>, vector<1x4xf32>
    %18 = vector.broadcast %17 : vector<1x4xf32> to vector<8x4xf32>
    %19 = arith.addf %16, %18 : vector<8x4xf32>
    %20 = arith.negf %19 : vector<8x4xf32>
    %21 = math.exp %20 : vector<8x4xf32>
    %cst_17 = arith.constant 1.000000e+00 : f32
    %22 = vector.broadcast %cst_17 : f32 to vector<8x4xf32>
    %23 = arith.addf %22, %21 : vector<8x4xf32>
    %24 = arith.divf %22, %23 : vector<8x4xf32>
    %c0_18 = arith.constant 0 : index
    %c0_19 = arith.constant 0 : index
    %25 = vector.load %arg8[%c0_18, %c0_19] : memref<8x4xf32, #tpu.memory_space<vmem>>, vector<8x4xf32>
    tpu.vector_store %arg8[%c0_18, %c0_19], %24 {strides = array<i32>} : memref<8x4xf32, #tpu.memory_space<vmem>>, vector<8x4xf32>,
    return
  }
  func.func @transform_0(%arg0: i32) -> (i32, i32) {
    %c0_i32 = arith.constant 0 : i32
    %c0_i32_0 = arith.constant 0 : i32
    return %arg0, %c0_i32 : i32, i32
  }
  func.func @transform_1(%arg0: i32) -> (i32, i32) {
    %c0_i32 = arith.constant 0 : i32
    %c0_i32_0 = arith.constant 0 : i32
    %c0_i32_1 = arith.constant 0 : i32
    return %c0_i32, %c0_i32_0 : i32, i32
  }
  func.func @transform_2(%arg0: i32) -> (i32, i32) {
    %c0_i32 = arith.constant 0 : i32
    %c0_i32_0 = arith.constant 0 : i32
    %c0_i32_1 = arith.constant 0 : i32
    return %c0_i32, %c0_i32_0 : i32, i32
  }
  func.func @transform_3(%arg0: i32) -> (i32, i32) {
    %c0_i32 = arith.constant 0 : i32
    %c0_i32_0 = arith.constant 0 : i32
    %c0_i32_1 = arith.constant 0 : i32
    return %c0_i32, %c0_i32_0 : i32, i32
  }
  func.func @transform_4(%arg0: i32) -> (i32, i32) {
    %c0_i32 = arith.constant 0 : i32
    %c0_i32_0 = arith.constant 0 : i32
    %c0_i32_1 = arith.constant 0 : i32
    return %c0_i32, %c0_i32_0 : i32, i32
  }
  func.func @transform_5(%arg0: i32) -> (i32, i32) {
    %c0_i32 = arith.constant 0 : i32
    %c0_i32_0 = arith.constant 0 : i32
    %c0_i32_1 = arith.constant 0 : i32
    return %c0_i32, %c0_i32_0 : i32, i32
  }
  func.func @transform_6(%arg0: i32) -> (i32, i32) {
    %c0_i32 = arith.constant 0 : i32
    %c0_i32_0 = arith.constant 0 : i32
    %c0_i32_1 = arith.constant 0 : i32
    return %c0_i32, %c0_i32_0 : i32, i32
  }
  func.func @transform_7(%arg0: i32) -> (i32, i32) {
    %c0_i32 = arith.constant 0 : i32
    %c0_i32_0 = arith.constant 0 : i32
    return %arg0, %c0_i32 : i32, i32
  }
}

</mosaic_0001>

<llo_original>
// kernel: tpu_custom_call.1
$region0: #{tpu_custom_call.1}
  #allocation0 [shape = 'u32[]', space=smem, size = 0x4, offset = 0x4, fixed_abs, tag = 'smem constant byte address 0x4 - core index']
  #allocation1 [shape = 'u32[144,128]{1,0:T(1,128)}', space=vmem, size = 0x12000, scoped, tag = 'internal scratch']
  %s0 = inlined_call_operand.vmem [shape: f32[8,32], index: 0, kind: input, shape index: {}]
  %s1 = inlined_call_operand.vmem [shape: f32[32,64], index: 1, kind: input, shape index: {}]
  %s2 = inlined_call_operand.vmem [shape: f32[1,64], index: 2, kind: input, shape index: {}]
  %s3 = inlined_call_operand.vmem [shape: f32[64,32], index: 3, kind: input, shape index: {}]
  %s4 = inlined_call_operand.vmem [shape: f32[1,32], index: 4, kind: input, shape index: {}]
  %s5 = inlined_call_operand.vmem [shape: f32[32,4], index: 5, kind: input, shape index: {}]
  %s6 = inlined_call_operand.vmem [shape: f32[1,4], index: 6, kind: input, shape index: {}]
  %s7 = inlined_call_operand.vmem [shape: f32[8,4], index: 7, kind: output, shape index: {}]
  %s8 = sld [smem:[#allocation0]]
  $region38: #{tpu_custom_call.1} parent=0
    _
  %s10 = ssub.s32 1, %s8
  %s11 = scalar_select 0, %s10, %s8
  // Predicated region
  $region2: #{tpu_custom_call.1} parent=0 // pred_check
    _
  $region3: #{tpu_custom_call.1} parent=0 // pred_check_branch
    %13 = sbr.rel (0) target = $region5
  $region4: #{tpu_custom_call.1} parent=0 // pred_region
    _
  $region5: #{tpu_custom_call.1} parent=0 // pred_fallthru
    _
  // Predicated region
  $region6: #{tpu_custom_call.1} parent=0 // pred_check
    _
  $region7: #{tpu_custom_call.1} parent=0 // pred_check_branch
    %15 = sbr.rel (0) target = $region9
  $region8: #{tpu_custom_call.1} parent=0 // pred_region
    _
  $region9: #{tpu_custom_call.1} parent=0 // pred_fallthru
    _
  // Predicated region
  $region10: #{tpu_custom_call.1} parent=0 // pred_check
    _
  $region11: #{tpu_custom_call.1} parent=0 // pred_check_branch
    %17 = sbr.rel (0) target = $region13
  $region12: #{tpu_custom_call.1} parent=0 // pred_region
    _
  $region13: #{tpu_custom_call.1} parent=0 // pred_fallthru
    _
  // Predicated region
  $region14: #{tpu_custom_call.1} parent=0 // pred_check
    _
  $region15: #{tpu_custom_call.1} parent=0 // pred_check_branch
    %19 = sbr.rel (0) target = $region17
  $region16: #{tpu_custom_call.1} parent=0 // pred_region
    _
  $region17: #{tpu_custom_call.1} parent=0 // pred_fallthru
    _
  // Predicated region
  $region18: #{tpu_custom_call.1} parent=0 // pred_check
    _
  $region19: #{tpu_custom_call.1} parent=0 // pred_check_branch
    %21 = sbr.rel (0) target = $region21
  $region20: #{tpu_custom_call.1} parent=0 // pred_region
    _
  $region21: #{tpu_custom_call.1} parent=0 // pred_fallthru
    _
  // Predicated region
  $region22: #{tpu_custom_call.1} parent=0 // pred_check
    _
  $region23: #{tpu_custom_call.1} parent=0 // pred_check_branch
    %23 = sbr.rel (0) target = $region25
  $region24: #{tpu_custom_call.1} parent=0 // pred_region
    _
  $region25: #{tpu_custom_call.1} parent=0 // pred_fallthru
    _
  // Predicated region
  $region26: #{tpu_custom_call.1} parent=0 // pred_check
    _
  $region27: #{tpu_custom_call.1} parent=0 // pred_check_branch
    %25 = sbr.rel (0) target = $region29
  $region28: #{tpu_custom_call.1} parent=0 // pred_region
    _
  $region29: #{tpu_custom_call.1} parent=0 // pred_fallthru
    _
  %v26 = vld [vmem:[%s0] sm:$0xff]
  %v27 = vld [vmem:[%s1] sm:$0xff]
  %v28 = vld [vmem:[%s1 + $0x8] sm:$0xff]
  %v29 = vld [vmem:[%s1 + $0x10] sm:$0xff]
  %v30 = vld [vmem:[%s1 + $0x18] sm:$0xff]
  %v31 = vld [vmem:[%s2] sm:$0x1]
  %v33 = vlaneseq
  %v34 = vshrl.u32 %v33, 7
  %v35 = vsub.s32 0, %v34
  %v36 = vrot.slane %v31, %v35
  %vm38 = vcmask 261120
  %v40 = vsel %vm38, %v26, 0
  %42 = vmatprep.subr.mxu0 0.0
  %43 = vmatpush1.msra.mxu0 0.0
  %44 = vmatprep.subr.mxu0 0.0
  %45 = vmatpush1.msra.mxu0 0.0
  %46 = vmatprep.subr.mxu0 0.0
  %47 = vmatpush1.msra.mxu0 0.0
  %48 = vmatprep.subr.mxu0 0.0
  %49 = vmatpush1.msra.mxu0 0.0
  %50 = vmatprep.subr.mxu0 0.0
  %51 = vmatpush1.msra.mxu0 0.0
  %52 = vmatprep.subr.mxu0 0.0
  %53 = vmatpush1.msra.mxu0 0.0
  %54 = vmatprep.subr.mxu0 0.0
  %55 = vmatpush1.msra.mxu0 0.0
  %56 = vmatprep.subr.mxu0 0.0
  %57 = vmatpush1.msra.mxu0 0.0
  %58 = vmatprep.subr.mxu0 0.0
  %59 = vmatpush1.msra.mxu0 0.0
  %60 = vmatprep.subr.mxu0 0.0
  %61 = vmatpush1.msra.mxu0 0.0
  %62 = vmatprep.subr.mxu0 0.0
  %63 = vmatpush1.msra.mxu0 0.0
  %64 = vmatprep.subr.mxu0 0.0
  %65 = vmatpush1.msra.mxu0 0.0
  %66 = vmatprep.subr.mxu0 0.0
  %67 = vmatpush1.msra.mxu0 %v30
  %68 = vmatprep.subr.mxu0 0.0
  %69 = vmatpush1.msra.mxu0 %v29
  %70 = vmatprep.subr.mxu0 0.0
  %71 = vmatpush1.msra.mxu0 %v28
  %72 = vmatprep.subr.mxu0 0.0
  %73 = vmatpush1.msra.mxu0 %v27
  %74 = vmatprep.subr.mxu0 0.0
  %75 = vmatpush2.msra.mxu0 0.0
  %76 = vmatprep.subr.mxu0 0.0
  %77 = vmatpush2.msra.mxu0 0.0
  %78 = vmatprep.subr.mxu0 0.0
  %79 = vmatpush2.msra.mxu0 0.0
  %80 = vmatprep.subr.mxu0 0.0
  %81 = vmatpush2.msra.mxu0 0.0
  %82 = vmatprep.subr.mxu0 0.0
  %83 = vmatpush2.msra.mxu0 0.0
  %84 = vmatprep.subr.mxu0 0.0
  %85 = vmatpush2.msra.mxu0 0.0
  %86 = vmatprep.subr.mxu0 0.0
  %87 = vmatpush2.msra.mxu0 0.0
  %88 = vmatprep.subr.mxu0 0.0
  %89 = vmatpush2.msra.mxu0 0.0
  %90 = vmatprep.subr.mxu0 0.0
  %91 = vmatpush2.msra.mxu0 0.0
  %92 = vmatprep.subr.mxu0 0.0
  %93 = vmatpush2.msra.mxu0 0.0
  %94 = vmatprep.subr.mxu0 0.0
  %95 = vmatpush2.msra.mxu0 0.0
  %96 = vmatprep.subr.mxu0 0.0
  %97 = vmatpush2.msra.mxu0 0.0
  %98 = vmatprep.subr.mxu0 0.0
  %99 = vmatpush2.msra.mxu0 0.0
  %100 = vmatprep.subr.mxu0 0.0
  %101 = vmatpush2.msra.mxu0 0.0
  %102 = vmatprep.subr.mxu0 0.0
  %103 = vmatpush2.msra.mxu0 0.0
  %104 = vmatprep.subr.mxu0 0.0
  %105 = vmatpush2.msra.mxu0 0.0
  %106 = vmatprep.mubr.f32.mxu0 0.0
  %107 = vmatmul.mubr.f32.gmra.mxu0 %v40
  %v108 = vpop.f32.mrf.mxu0
  %v109 = vadd.f32 %v36, %v108
  %v110 = vpop.f32.mrf.mxu0
  %111 = vdwg.mxu0
  %v112 = vmax.f32 %v109, 0.0
  %v113 = vld [vmem:[%s3] sm:$0xff]
  %v114 = vld [vmem:[%s3 + $0x8] sm:$0xff]
  %v115 = vld [vmem:[%s3 + $0x10] sm:$0xff]
  %v116 = vld [vmem:[%s3 + $0x18] sm:$0xff]
  %v117 = vld [vmem:[%s3 + $0x20] sm:$0xff]
  %v118 = vld [vmem:[%s3 + $0x28] sm:$0xff]
  %v119 = vld [vmem:[%s3 + $0x30] sm:$0xff]
  %v120 = vld [vmem:[%s3 + $0x38] sm:$0xff]
  %v121 = vld [vmem:[%s4] sm:$0x1]
  %v123 = vlaneseq
  %v124 = vshrl.u32 %v123, 7
  %v125 = vsub.s32 0, %v124
  %v126 = vrot.slane %v121, %v125
  %vm128 = vcmask 523264
  %v130 = vsel %vm128, %v112, 0
  %132 = vmatprep.subr.mxu0 0.0
  %133 = vmatpush1.msra.mxu0 0.0
  %134 = vmatprep.subr.mxu0 0.0
  %135 = vmatpush1.msra.mxu0 0.0
  %136 = vmatprep.subr.mxu0 0.0
  %137 = vmatpush1.msra.mxu0 0.0
  %138 = vmatprep.subr.mxu0 0.0
  %139 = vmatpush1.msra.mxu0 0.0
  %140 = vmatprep.subr.mxu0 0.0
  %141 = vmatpush1.msra.mxu0 0.0
  %142 = vmatprep.subr.mxu0 0.0
  %143 = vmatpush1.msra.mxu0 0.0
  %144 = vmatprep.subr.mxu0 0.0
  %145 = vmatpush1.msra.mxu0 0.0
  %146 = vmatprep.subr.mxu0 0.0
  %147 = vmatpush1.msra.mxu0 0.0
  %148 = vmatprep.subr.mxu0 0.0
  %149 = vmatpush1.msra.mxu0 %v120
  %150 = vmatprep.subr.mxu0 0.0
  %151 = vmatpush1.msra.mxu0 %v119
  %152 = vmatprep.subr.mxu0 0.0
  %153 = vmatpush1.msra.mxu0 %v118
  %154 = vmatprep.subr.mxu0 0.0
  %155 = vmatpush1.msra.mxu0 %v117
  %156 = vmatprep.subr.mxu0 0.0
  %157 = vmatpush1.msra.mxu0 %v116
  %158 = vmatprep.subr.mxu0 0.0
  %159 = vmatpush1.msra.mxu0 %v115
  %160 = vmatprep.subr.mxu0 0.0
  %161 = vmatpush1.msra.mxu0 %v114
  %162 = vmatprep.subr.mxu0 0.0
  %163 = vmatpush1.msra.mxu0 %v113
  %164 = vmatprep.subr.mxu0 0.0
  %165 = vmatpush2.msra.mxu0 0.0
  %166 = vmatprep.subr.mxu0 0.0
  %167 = vmatpush2.msra.mxu0 0.0
  %168 = vmatprep.subr.mxu0 0.0
  %169 = vmatpush2.msra.mxu0 0.0
  %170 = vmatprep.subr.mxu0 0.0
  %171 = vmatpush2.msra.mxu0 0.0
  %172 = vmatprep.subr.mxu0 0.0
  %173 = vmatpush2.msra.mxu0 0.0
  %174 = vmatprep.subr.mxu0 0.0
  %175 = vmatpush2.msra.mxu0 0.0
  %176 = vmatprep.subr.mxu0 0.0
  %177 = vmatpush2.msra.mxu0 0.0
  %178 = vmatprep.subr.mxu0 0.0
  %179 = vmatpush2.msra.mxu0 0.0
  %180 = vmatprep.subr.mxu0 0.0
  %181 = vmatpush2.msra.mxu0 0.0
  %182 = vmatprep.subr.mxu0 0.0
  %183 = vmatpush2.msra.mxu0 0.0
  %184 = vmatprep.subr.mxu0 0.0
  %185 = vmatpush2.msra.mxu0 0.0
  %186 = vmatprep.subr.mxu0 0.0
  %187 = vmatpush2.msra.mxu0 0.0
  %188 = vmatprep.subr.mxu0 0.0
  %189 = vmatpush2.msra.mxu0 0.0
  %190 = vmatprep.subr.mxu0 0.0
  %191 = vmatpush2.msra.mxu0 0.0
  %192 = vmatprep.subr.mxu0 0.0
  %193 = vmatpush2.msra.mxu0 0.0
  %194 = vmatprep.subr.mxu0 0.0
  %195 = vmatpush2.msra.mxu0 0.0
  %196 = vmatprep.mubr.f32.mxu0 0.0
  %197 = vmatmul.mubr.f32.gmra.mxu0 %v130
  %v198 = vpop.f32.mrf.mxu0
  %v199 = vadd.f32 %v126, %v198
  %v200 = vpop.f32.mrf.mxu0
  %201 = vdwg.mxu0
  %v202 = vmax.f32 %v199, 0.0
  %v203 = vld [vmem:[%s5] sm:$0xff]
  %v204 = vld [vmem:[%s5 + $0x8] sm:$0xff]
  %v205 = vld [vmem:[%s5 + $0x10] sm:$0xff]
  %v206 = vld [vmem:[%s5 + $0x18] sm:$0xff]
  %v207 = vld [vmem:[%s6] sm:$0x1]
  %v209 = vlaneseq
  %v210 = vshrl.u32 %v209, 7
  %v211 = vsub.s32 0, %v210
  %v212 = vrot.slane %v207, %v211
  %v215 = vsel %vm38, %v202, 0
  %217 = vmatprep.subr.mxu0 0.0
  %218 = vmatpush1.msra.mxu0 0.0
  %219 = vmatprep.subr.mxu0 0.0
  %220 = vmatpush1.msra.mxu0 0.0
  %221 = vmatprep.subr.mxu0 0.0
  %222 = vmatpush1.msra.mxu0 0.0
  %223 = vmatprep.subr.mxu0 0.0
  %224 = vmatpush1.msra.mxu0 0.0
  %225 = vmatprep.subr.mxu0 0.0
  %226 = vmatpush1.msra.mxu0 0.0
  %227 = vmatprep.subr.mxu0 0.0
  %228 = vmatpush1.msra.mxu0 0.0
  %229 = vmatprep.subr.mxu0 0.0
  %230 = vmatpush1.msra.mxu0 0.0
  %231 = vmatprep.subr.mxu0 0.0
  %232 = vmatpush1.msra.mxu0 0.0
  %233 = vmatprep.subr.mxu0 0.0
  %234 = vmatpush1.msra.mxu0 0.0
  %235 = vmatprep.subr.mxu0 0.0
  %236 = vmatpush1.msra.mxu0 0.0
  %237 = vmatprep.subr.mxu0 0.0
  %238 = vmatpush1.msra.mxu0 0.0
  %239 = vmatprep.subr.mxu0 0.0
  %240 = vmatpush1.msra.mxu0 0.0
  %241 = vmatprep.subr.mxu0 0.0
  %242 = vmatpush1.msra.mxu0 %v206
  %243 = vmatprep.subr.mxu0 0.0
  %244 = vmatpush1.msra.mxu0 %v205
  %245 = vmatprep.subr.mxu0 0.0
  %246 = vmatpush1.msra.mxu0 %v204
  %247 = vmatprep.subr.mxu0 0.0
  %248 = vmatpush1.msra.mxu0 %v203
  %249 = vmatprep.subr.mxu0 0.0
  %250 = vmatpush2.msra.mxu0 0.0
  %251 = vmatprep.subr.mxu0 0.0
  %252 = vmatpush2.msra.mxu0 0.0
  %253 = vmatprep.subr.mxu0 0.0
  %254 = vmatpush2.msra.mxu0 0.0
  %255 = vmatprep.subr.mxu0 0.0
  %256 = vmatpush2.msra.mxu0 0.0
  %257 = vmatprep.subr.mxu0 0.0
  %258 = vmatpush2.msra.mxu0 0.0
  %259 = vmatprep.subr.mxu0 0.0
  %260 = vmatpush2.msra.mxu0 0.0
  %261 = vmatprep.subr.mxu0 0.0
  %262 = vmatpush2.msra.mxu0 0.0
  %263 = vmatprep.subr.mxu0 0.0
  %264 = vmatpush2.msra.mxu0 0.0
  %265 = vmatprep.subr.mxu0 0.0
  %266 = vmatpush2.msra.mxu0 0.0
  %267 = vmatprep.subr.mxu0 0.0
  %268 = vmatpush2.msra.mxu0 0.0
  %269 = vmatprep.subr.mxu0 0.0
  %270 = vmatpush2.msra.mxu0 0.0
  %271 = vmatprep.subr.mxu0 0.0
  %272 = vmatpush2.msra.mxu0 0.0
  %273 = vmatprep.subr.mxu0 0.0
  %274 = vmatpush2.msra.mxu0 0.0
  %275 = vmatprep.subr.mxu0 0.0
  %276 = vmatpush2.msra.mxu0 0.0
  %277 = vmatprep.subr.mxu0 0.0
  %278 = vmatpush2.msra.mxu0 0.0
  %279 = vmatprep.subr.mxu0 0.0
  %280 = vmatpush2.msra.mxu0 0.0
  %281 = vmatprep.mubr.f32.mxu0 0.0
  %282 = vmatmul.mubr.f32.gmra.mxu0 %v215
  %v283 = vpop.f32.mrf.mxu0
  %v284 = vadd.f32 %v212, %v283
  %v285 = vpop.f32.mrf.mxu0
  %286 = vdwg.mxu0
  %v287 = vxor.u32 %v284, 2147483648
  %v288 = vmul.f32 %v287, 1.442695
  %v289 = vpow.pop %v288
  %v290 = vadd.f32 %v289, 1.0
  %v291 = vrcp.pop %v290
  %v292 = vmul.f32 1.0, %v291
  %vm293 = vcmask 31744
  %294 = vst.msk [vmem:[%s7] sm:$0xff] %vm293, %v292
  // Predicated region
  $region30: #{tpu_custom_call.1} parent=0 // pred_check
    _
  $region31: #{tpu_custom_call.1} parent=0 // pred_check_branch
    %296 = sbr.rel (0) target = $region33
  $region32: #{tpu_custom_call.1} parent=0 // pred_region
    _
  $region33: #{tpu_custom_call.1} parent=0 // pred_fallthru
    _
  // Predicated region
  $region34: #{tpu_custom_call.1} parent=0 // pred_check
    _
  $region35: #{tpu_custom_call.1} parent=0 // pred_check_branch
    %298 = sbr.rel (0) target = $region37
  $region36: #{tpu_custom_call.1} parent=0 // pred_region
    _
  $region37: #{tpu_custom_call.1} parent=0 // pred_fallthru
    _

</llo_original>
